<compile_context>
chip_gen: v7x
topology: tpu7x:2x2x1
jax: 0.10.0
libtpu: 0.0.40
codegen_flags: <defaults>
</compile_context>

<pallas_src>
import functools

import jax
import jax.numpy as jnp
from jax import lax
from jax.experimental import pallas as pl
from jax.experimental.pallas import tpu as pltpu

_EPS = 1e-12          # F.normalize default eps
_NEG_INF = -1e30      # large-negative mask value (avoids inf - inf NaNs)


# ------------------------- generation-aware tiling policy -------------------------

def _tpu_vmem_bytes():
    try:
        return int(pltpu.get_tpu_info().vmem_capacity_bytes)
    except Exception:
        return 64 * 1024 * 1024   # conservative fallback: v7x per-TensorCore VMEM


_VMEM_CAP = _tpu_vmem_bytes()
if _VMEM_CAP >= 100 * 1024 * 1024:           # v5e / v6e: 128 MiB VMEM per core
    _TQ_CAP, _TQ_BLOCK_BYTES = 512, 16 * 1024 * 1024
    _TK_CAP, _TK_BLOCK_BYTES = 2048, 16 * 1024 * 1024
    _VMEM_LIMIT = 96 * 1024 * 1024
else:                                         # v7x: 64 MiB per TensorCore
    _TQ_CAP, _TQ_BLOCK_BYTES = 512, 8 * 1024 * 1024
    _TK_CAP, _TK_BLOCK_BYTES = 1024, 12 * 1024 * 1024
    _VMEM_LIMIT = 48 * 1024 * 1024

_COMPILER_PARAMS = pltpu.CompilerParams(
    dimension_semantics=("parallel", "arbitrary"),   # q-tiles split across v7x TCs
    vmem_limit_bytes=_VMEM_LIMIT,
)


def _round_up(x, m):
    return ((x + m - 1) // m) * m


def _choose_tile(n_rows, d, cap, max_block_bytes, itemsize=2):
    t = cap
    while t > 8 and t * d * itemsize > max_block_bytes:
        t //= 2
    t = max(t, 8)
    return min(t, _round_up(n_rows, 8))


def _pick_tile_q(n, d):
    t = _choose_tile(n, d, _TQ_CAP, _TQ_BLOCK_BYTES)
    # Prefer >= 2 query tiles so v7x megacore can split the "parallel" grid axis.
    if n > 8:
        t = min(t, _round_up((n + 1) // 2, 8))
    return t


def _pad_rows(x, target_rows):
    n = x.shape[0]
    if n == target_rows:
        return x
    return jnp.pad(x, ((0, target_rows - n), (0, 0)))


def _l2_normalize(x):
    # Matches F.normalize: x / max(||x||, eps) == x * rsqrt(max(sumsq, eps^2))
    ss = jnp.sum(x * x, axis=-1, keepdims=True)
    return x * lax.rsqrt(jnp.maximum(ss, _EPS * _EPS))


# ----------------------------------- kernel ---------------------------------------

def _lse_kernel(q_ref, k_ref, lse_ref, m_ref, l_ref, *, inv_t, n_keys, tile_k):
    """Online log-sum-exp of (keys @ q^T) * inv_t over the key grid axis.

    Scores are laid out (tk, tq): keys on sublanes, queries on lanes, so the running
    per-query max / denominator and the final LSE are lane-major (1, tq) vectors and
    the output store is a full-lane (unmasked) store.
    """
    kstep = pl.program_id(1)
    last = pl.num_programs(1) - 1

    @pl.when(kstep == 0)
    def _init():
        m_ref[...] = jnp.full(m_ref.shape, _NEG_INF, jnp.float32)
        l_ref[...] = jnp.zeros(l_ref.shape, jnp.float32)

    # bf16 MXU matmul with f32 accumulation; 1/T applied to the f32 accumulator so
    # logit quantization error does not scale with 1/temperature.
    s = lax.dot_general(k_ref[...], q_ref[...],
                        dimension_numbers=(((1,), (1,)), ((), ())),
                        preferred_element_type=jnp.float32) * inv_t      # (tk, tq)

    def update(scores):
        m_prev = m_ref[...]
        m_new = jnp.maximum(m_prev, jnp.max(scores, axis=0, keepdims=True))
        l_ref[...] = (l_ref[...] * jnp.exp(m_prev - m_new)
                      + jnp.sum(jnp.exp(scores - m_new), axis=0, keepdims=True))
        m_ref[...] = m_new

    if n_keys % tile_k != 0:
        # Only the final key tile contains padded rows -> mask only there.
        @pl.when(kstep != last)
        def _full():
            update(s)

        @pl.when(kstep == last)
        def _partial():
            row = lax.broadcasted_iota(jnp.int32, s.shape, 0) + kstep * tile_k
            update(jnp.where(row < n_keys, s, _NEG_INF))
    else:
        update(s)

    @pl.when(kstep == last)
    def _finalize():
        lse_ref[...] = jnp.reshape(m_ref[...] + jnp.log(l_ref[...]), lse_ref.shape)


# ---------------------------------- wrapper ----------------------------------------

def info_nce_pallas(query, positive_key, negative_keys=None, temperature=0.1,
                    reduction='mean', negative_mode='unpaired',
                    tile_q=None, tile_k=None):
    if query.ndim != 2:
        raise ValueError('<query> must have 2 dimensions.')
    if positive_key.ndim != 2:
        raise ValueError('<positive_key> must have 2 dimensions.')
    if query.shape[0] != positive_key.shape[0]:
        raise ValueError('<query> and <positive_key> must have the same number of samples.')
    if query.shape[-1] != positive_key.shape[-1]:
        raise ValueError('Vectors of <query> and <positive_key> should have the same number of components.')
    if reduction not in ('none', 'sum', 'mean'):
        raise ValueError("reduction must be one of ['none', 'sum', 'mean'].")

    n, d = query.shape
    inv_t = float(1.0 / temperature)

    # ---- O(N*D) prep in plain JAX: normalize, positive logit, bf16 cast ----
    qn = _l2_normalize(query.astype(jnp.float32))
    pn = _l2_normalize(positive_key.astype(jnp.float32))
    pos = jnp.sum(qn * pn, axis=-1) * inv_t                      # (N,) f32 positive logit

    if negative_keys is None:
        keys = pn                                                # in-batch negatives
        n_keys = n
    else:
        if negative_mode != 'unpaired':
            # TODO(synk): negative_mode='paired' (3-D negative_keys) not implemented in Pallas.
            raise NotImplementedError("only negative_mode='unpaired' is implemented")
        if negative_keys.ndim != 2:
            raise ValueError("<negative_keys> must have 2 dimensions if <negative_mode> == 'unpaired'.")
        if negative_keys.shape[-1] != d:
            raise ValueError('Vectors of <query> and <negative_keys> should have the same number of components.')
        keys = _l2_normalize(negative_keys.astype(jnp.float32))
        n_keys = negative_keys.shape[0]

    q_bf = qn.astype(jnp.bfloat16)
    k_bf = keys.astype(jnp.bfloat16)

    # ---- tiling ----
    tq = tile_q if tile_q is not None else _pick_tile_q(n, d)
    tk = tile_k if tile_k is not None else _choose_tile(n_keys, d, _TK_CAP, _TK_BLOCK_BYTES)
    npad = _round_up(n, tq)
    kpad = _round_up(n_keys, tk)
    q_p = _pad_rows(q_bf, npad)
    k_p = _pad_rows(k_bf, kpad)
    n_q_tiles = npad // tq
    grid = (n_q_tiles, kpad // tk)

    kernel = functools.partial(_lse_kernel, inv_t=inv_t, n_keys=n_keys, tile_k=tk)
    lse_tiles = pl.pallas_call(
        kernel,
        out_shape=jax.ShapeDtypeStruct((n_q_tiles, 1, tq), jnp.float32),
        grid_spec=pltpu.PrefetchScalarGridSpec(
            num_scalar_prefetch=0,
            grid=grid,
            in_specs=[pl.BlockSpec((tq, d), lambda i, k: (i, 0)),   # query rows (resident per i)
                      pl.BlockSpec((tk, d), lambda i, k: (k, 0))],  # key / negative rows (streamed)
            out_specs=pl.BlockSpec((1, 1, tq), lambda i, k: (i, 0, 0)),
            scratch_shapes=[pltpu.VMEM((1, tq), jnp.float32),       # running max (lane-major)
                            pltpu.VMEM((1, tq), jnp.float32)],      # running denominator
        ),
        compiler_params=_COMPILER_PARAMS,
    )(q_p, k_p)

    lse = lse_tiles.reshape(npad)[:n]
    if negative_keys is None:
        per_row = lse - pos                       # diagonal term is the positive logit
    else:
        per_row = jnp.logaddexp(pos, lse) - pos   # == LSE([pos, negatives]) - pos

    if reduction == 'mean':
        return jnp.mean(per_row)
    if reduction == 'sum':
        return jnp.sum(per_row)
    return per_row


class InfoNCE:
    def __init__(self, temperature=0.1, reduction='mean', negative_mode='unpaired'):
        self.temperature = temperature
        self.reduction = reduction
        self.negative_mode = negative_mode

    def __call__(self, query, positive_key, negative_keys=None):
        return info_nce_pallas(query, positive_key, negative_keys,
                               temperature=self.temperature,
                               reduction=self.reduction,
                               negative_mode=self.negative_mode)


# ----------------------------- pure-JAX references -----------------------------

def _normalize_ref(x, use_rsqrt):
    x = x.astype(jnp.float32)
    if use_rsqrt:
        ss = jnp.sum(x * x, axis=-1, keepdims=True)
        return x * lax.rsqrt(jnp.maximum(ss, _EPS * _EPS))
    nrm = jnp.sqrt(jnp.sum(x * x, axis=-1, keepdims=True))
    return x / jnp.maximum(nrm, _EPS)


def _ref_info_nce(query, positive_key, negative_keys=None, temperature=0.1,
                  bf16_matmul=False):
    """Reference.  bf16_matmul=True mirrors the kernel's precision recipe exactly."""
    qn = _normalize_ref(query, bf16_matmul)
    pn = _normalize_ref(positive_key, bf16_matmul)
    inv_t = 1.0 / temperature
    pos = jnp.sum(qn * pn, axis=-1) * inv_t                     # f32 positive/diag logit
    keys = pn if negative_keys is None else _normalize_ref(negative_keys, bf16_matmul)
    qm, km = qn, keys
    if bf16_matmul:
        qm, km = qm.astype(jnp.bfloat16), km.astype(jnp.bfloat16)
    s = lax.dot_general(qm, km, dimension_numbers=(((1,), (1,)), ((), ())),
                        preferred_element_type=jnp.float32) * inv_t     # (N, K)
    lse = jax.scipy.special.logsumexp(s, axis=-1)
    if negative_keys is not None:
        lse = jnp.logaddexp(pos, lse)
    return jnp.mean(lse - pos)


if __name__ == "__main__":
    key = jax.random.PRNGKey(0)
    k1, k2, k3 = jax.random.split(key, 3)
    N, M, D = 8, 16, 32  # batch, num_negatives, embedding size
    query = jax.random.normal(k1, (N, D), dtype=jnp.float32)
    positive_key = jax.random.normal(k2, (N, D), dtype=jnp.float32)
    negative_keys = jax.random.normal(k3, (M, D), dtype=jnp.float32)

    loss_mod = InfoNCE(temperature=0.1, reduction='mean', negative_mode='unpaired')

    out_unpaired = jax.block_until_ready(loss_mod(query, positive_key, negative_keys))
    out_self = jax.block_until_ready(loss_mod(query, positive_key))

    # Tight check vs precision-matched (bf16-matmul) reference.
    assert jnp.allclose(out_unpaired,
                        _ref_info_nce(query, positive_key, negative_keys, bf16_matmul=True),
                        rtol=5e-3, atol=5e-3)
    assert jnp.allclose(out_self,
                        _ref_info_nce(query, positive_key, bf16_matmul=True),
                        rtol=5e-3, atol=5e-3)
    # Loose check vs full-f32 PyTorch-semantics reference (bf16 MXU inputs).
    assert jnp.allclose(out_unpaired, _ref_info_nce(query, positive_key, negative_keys),
                        rtol=5e-2, atol=5e-2)
    assert jnp.allclose(out_self, _ref_info_nce(query, positive_key),
                        rtol=5e-2, atol=5e-2)

    # Exercise the multi-tile grid, online softmax and last-tile-only masking with tiny tiles.
    kk1, kk2, kk3 = jax.random.split(jax.random.PRNGKey(0), 3)
    N2, M2 = 20, 21
    q2 = jax.random.normal(kk1, (N2, D), dtype=jnp.float32)
    p2 = jax.random.normal(kk2, (N2, D), dtype=jnp.float32)
    neg2 = jax.random.normal(kk3, (M2, D), dtype=jnp.float32)
    out2_unpaired = jax.block_until_ready(
        info_nce_pallas(q2, p2, neg2, temperature=0.1, tile_q=8, tile_k=8))
    out2_self = jax.block_until_ready(
        info_nce_pallas(q2, p2, None, temperature=0.1, tile_q=8, tile_k=8))
    assert jnp.allclose(out2_unpaired, _ref_info_nce(q2, p2, neg2, bf16_matmul=True),
                        rtol=5e-3, atol=5e-3)
    assert jnp.allclose(out2_self, _ref_info_nce(q2, p2, bf16_matmul=True),
                        rtol=5e-3, atol=5e-3)

    print("KERNEL_OK")
</pallas_src>

<mosaic_0001>
module attributes {stable_mosaic.version = 11 : i64} {
  func.func @_lse_kernel(%arg0: i32, %arg1: i32, %arg2: memref<8x32xbf16, #tpu.memory_space<vmem>>, %arg3: memref<16x32xbf16, #tpu.memory_space<vmem>>, %arg4: memref<1x1x8xf32, #tpu.memory_space<vmem>>, %arg5: memref<1x8xf32, #tpu.memory_space<vmem>>, %arg6: memref<1x8xf32, #tpu.memory_space<vmem>>) attributes {dimension_semantics = [#tpu.dimension_semantics<parallel>, #tpu.dimension_semantics<arbitrary>], iteration_bounds = array<i64: 1, 1>, scalar_prefetch = 0 : i64, scratch_operands = 2 : i64, tpu.core_type = #tpu.core_type<tc>, window_params = [{transform_indices = @transform_0, window_bounds = array<i64: 8, 32>}, {transform_indices = @transform_1, window_bounds = array<i64: 16, 32>}, {transform_indices = @transform_2, window_bounds = array<i64: 1, 1, 8>}]} {
    %c0_i32 = arith.constant 0 : i32
    %0 = arith.cmpi eq, %arg1, %c0_i32 : i32
    %1 = arith.extui %0 : i1 to i32
    %c0_i32_0 = arith.constant 0 : i32
    %2 = arith.cmpi ne, %1, %c0_i32_0 : i32
    scf.if %2 {
      %cst_17 = arith.constant -1.000000e+30 : f32
      %27 = vector.broadcast %cst_17 : f32 to vector<1x8xf32>
      %c0_18 = arith.constant 0 : index
      %c0_19 = arith.constant 0 : index
      %28 = vector.load %arg5[%c0_18, %c0_19] : memref<1x8xf32, #tpu.memory_space<vmem>>, vector<1x8xf32>
      tpu.vector_store %arg5[%c0_18, %c0_19], %27 {strides = array<i32>} : memref<1x8xf32, #tpu.memory_space<vmem>>, vector<1x8xf32>,
      %cst_20 = arith.constant 0.000000e+00 : f32
      %29 = vector.broadcast %cst_20 : f32 to vector<1x8xf32>
      %c0_21 = arith.constant 0 : index
      %c0_22 = arith.constant 0 : index
      %30 = vector.load %arg6[%c0_21, %c0_22] : memref<1x8xf32, #tpu.memory_space<vmem>>, vector<1x8xf32>
      tpu.vector_store %arg6[%c0_21, %c0_22], %29 {strides = array<i32>} : memref<1x8xf32, #tpu.memory_space<vmem>>, vector<1x8xf32>,
    } else {
    }
    %c0 = arith.constant 0 : index
    %c0_1 = arith.constant 0 : index
    %3 = vector.load %arg3[%c0, %c0_1] : memref<16x32xbf16, #tpu.memory_space<vmem>>, vector<16x32xbf16>
    %c0_2 = arith.constant 0 : index
    %c0_3 = arith.constant 0 : index
    %4 = vector.load %arg2[%c0_2, %c0_3] : memref<8x32xbf16, #tpu.memory_space<vmem>>, vector<8x32xbf16>
    %cst = arith.constant dense<0.000000e+00> : vector<16x8xf32>
    %5 = tpu.matmul %3, %4, %cst {dimension_numbers = #tpu.dot_dimension_numbers<[1], [1], [0], [0], [0, 0, 1, 0], [], []>} : vector<16x32xbf16>, vector<8x32xbf16>, vector<16x8xf32> -> vector<16x8xf32>
    %cst_4 = arith.constant 1.000000e+01 : f32
    %6 = vector.broadcast %cst_4 : f32 to vector<16x8xf32>
    %7 = arith.mulf %5, %6 : vector<16x8xf32>
    %c0_5 = arith.constant 0 : index
    %c0_6 = arith.constant 0 : index
    %8 = vector.load %arg5[%c0_5, %c0_6] : memref<1x8xf32, #tpu.memory_space<vmem>>, vector<1x8xf32>
    %cst_7 = arith.constant dense<0xFF800000> : vector<8xf32>
    %9 = vector.multi_reduction <maximumf>, %7, %cst_7 [0] : vector<16x8xf32> to vector<8xf32>
    %10 = vector.shape_cast %9 : vector<8xf32> to vector<1x8xf32>
    %11 = arith.maximumf %8, %10 : vector<1x8xf32>
    %c0_8 = arith.constant 0 : index
    %c0_9 = arith.constant 0 : index
    %12 = vector.load %arg6[%c0_8, %c0_9] : memref<1x8xf32, #tpu.memory_space<vmem>>, vector<1x8xf32>
    %13 = arith.subf %8, %11 : vector<1x8xf32>
    %14 = math.exp %13 : vector<1x8xf32>
    %15 = arith.mulf %12, %14 : vector<1x8xf32>
    %16 = vector.broadcast %11 : vector<1x8xf32> to vector<16x8xf32>
    %17 = arith.subf %7, %16 : vector<16x8xf32>
    %18 = math.exp %17 : vector<16x8xf32>
    %cst_10 = arith.constant dense<0.000000e+00> : vector<8xf32>
    %19 = vector.multi_reduction <add>, %18, %cst_10 [0] : vector<16x8xf32> to vector<8xf32>
    %20 = vector.shape_cast %19 : vector<8xf32> to vector<1x8xf32>
    %21 = arith.addf %15, %20 : vector<1x8xf32>
    %c0_11 = arith.constant 0 : index
    %c0_12 = arith.constant 0 : index
    %22 = vector.load %arg6[%c0_11, %c0_12] : memref<1x8xf32, #tpu.memory_space<vmem>>, vector<1x8xf32>
    tpu.vector_store %arg6[%c0_11, %c0_12], %21 {strides = array<i32>} : memref<1x8xf32, #tpu.memory_space<vmem>>, vector<1x8xf32>,
    %c0_13 = arith.constant 0 : index
    %c0_14 = arith.constant 0 : index
    %23 = vector.load %arg5[%c0_13, %c0_14] : memref<1x8xf32, #tpu.memory_space<vmem>>, vector<1x8xf32>
    tpu.vector_store %arg5[%c0_13, %c0_14], %11 {strides = array<i32>} : memref<1x8xf32, #tpu.memory_space<vmem>>, vector<1x8xf32>,
    %c0_i32_15 = arith.constant 0 : i32
    %24 = arith.cmpi eq, %arg1, %c0_i32_15 : i32
    %25 = arith.extui %24 : i1 to i32
    %c0_i32_16 = arith.constant 0 : i32
    %26 = arith.cmpi ne, %25, %c0_i32_16 : i32
    scf.if %26 {
      %c0_17 = arith.constant 0 : index
      %c0_18 = arith.constant 0 : index
      %27 = vector.load %arg5[%c0_17, %c0_18] : memref<1x8xf32, #tpu.memory_space<vmem>>, vector<1x8xf32>
      %c0_19 = arith.constant 0 : index
      %c0_20 = arith.constant 0 : index
      %28 = vector.load %arg6[%c0_19, %c0_20] : memref<1x8xf32, #tpu.memory_space<vmem>>, vector<1x8xf32>
      %29 = math.log %28 : vector<1x8xf32>
      %30 = arith.addf %27, %29 : vector<1x8xf32>
      %31 = vector.shape_cast %30 : vector<1x8xf32> to vector<1x1x8xf32>
      %c0_21 = arith.constant 0 : index
      %c0_22 = arith.constant 0 : index
      %c0_23 = arith.constant 0 : index
      %32 = vector.load %arg4[%c0_21, %c0_22, %c0_23] : memref<1x1x8xf32, #tpu.memory_space<vmem>>, vector<1x1x8xf32>
      tpu.vector_store %arg4[%c0_21, %c0_22, %c0_23], %31 {strides = array<i32>} : memref<1x1x8xf32, #tpu.memory_space<vmem>>, vector<1x1x8xf32>,
    } else {
    }
    return
  }
  func.func @transform_0(%arg0: i32, %arg1: i32) -> (i32, i32) {
    %c0_i32 = arith.constant 0 : i32
    %c0_i32_0 = arith.constant 0 : i32
    return %arg0, %c0_i32 : i32, i32
  }
  func.func @transform_1(%arg0: i32, %arg1: i32) -> (i32, i32) {
    %c0_i32 = arith.constant 0 : i32
    %c0_i32_0 = arith.constant 0 : i32
    return %arg1, %c0_i32 : i32, i32
  }
  func.func @transform_2(%arg0: i32, %arg1: i32) -> (i32, i32, i32) {
    %c0_i32 = arith.constant 0 : i32
    %c0_i32_0 = arith.constant 0 : i32
    %c0_i32_1 = arith.constant 0 : i32
    return %arg0, %c0_i32, %c0_i32_0 : i32, i32, i32
  }
}

</mosaic_0001>

<llo_original>
// kernel: tpu_custom_call.1
$region0: #{tpu_custom_call.1}
  #allocation0 [shape = 'u32[]', space=smem, size = 0x4, offset = 0x4, fixed_abs, tag = 'smem constant byte address 0x4 - core index']
  #allocation1 [shape = 'u32[144,128]{1,0:T(1,128)}', space=vmem, size = 0x12000, scoped, tag = 'internal scratch']
  #allocation2 [shape = 'f32[1,8]{1,0:T(1,128)}', space=vmem, size = 0x200, scoped, tag = 'scratch operand']
  #allocation3 [shape = 'f32[1,8]{1,0:T(1,128)}', space=vmem, size = 0x200, scoped, tag = 'scratch operand']
  %s0 = inlined_call_operand.hbm [shape: bf16[8,32], index: 0, kind: input, shape index: {}]
  %s1 = inlined_call_operand.hbm [shape: bf16[16,32], index: 1, kind: input, shape index: {}]
  %s2 = inlined_call_operand.hbm [shape: f32[1,1,8], index: 2, kind: output, shape index: {}]
  %s3 = sld [smem:[#allocation0]]
  $region34: #{tpu_custom_call.1} parent=0
    _
  %s5 = ssub.s32 1, %s3
  %s6 = scalar_select 0, %s5, %s3
  $region1: #{tpu_custom_call.1} parent=0
    #allocation4 [shape = 'u8[2048]{0}', space=vmem, size = 0x800, scoped, tag = 'input window, operand 0, single buffered']
    #allocation5 [shape = 's32[1]{0}', space=sflag, size = 0x4, scoped, tag = 'scoped memory for tpu_custom_call.1']
    #allocation6 [shape = 's32[1]{0}', space=sflag, size = 0x4, scoped, tag = 'scoped memory for tpu_custom_call.1']
    #allocation7 [shape = 'u8[4096]{0}', space=vmem, size = 0x1000, scoped, tag = 'input window, operand 1, single buffered']
    #allocation8 [shape = 's32[1]{0}', space=sflag, size = 0x4, scoped, tag = 'scoped memory for tpu_custom_call.1']
    #allocation9 [shape = 'u8[512]{0}', space=vmem, size = 0x400, scoped, tag = 'output window, operand 0, single buffered']
    %7 = vsyncpa [#allocation5], 0
    %8 = vsyncpa [#allocation8], 0
    %9 = vsyncpa [#allocation6], 0
    // Predicated region
    $region2: #{tpu_custom_call.1} parent=1 // pred_check
      _
    $region3: #{tpu_custom_call.1} parent=1 // pred_check_branch
      %11 = sbr.rel (0) target = $region5
    $region4: #{tpu_custom_call.1} parent=1 // pred_region
      %s13 = ssub.s32 64, 64
      %14 = vsyncadd [#allocation5], %s13
      %s16 = sshll.u32 [#allocation4], 4
      %s17 = int_to_ptr.vmem [resolvable:$true] %s16
      %19 = dma.hbm_to_vmem [thread:$0]  %s0, 64, %s17, [#allocation5]
    $region5: #{tpu_custom_call.1} parent=1 // pred_fallthru
      _
    // Predicated region
    $region6: #{tpu_custom_call.1} parent=1 // pred_check
      _
    $region7: #{tpu_custom_call.1} parent=1 // pred_check_branch
      %21 = sbr.rel (0) target = $region9
    $region8: #{tpu_custom_call.1} parent=1 // pred_region
      %s23 = ssub.s32 128, 128
      %24 = vsyncadd [#allocation8], %s23
      %s25 = sshll.u32 [#allocation7], 4
      %s26 = int_to_ptr.vmem [resolvable:$true] %s25
      %31 = dma.hbm_to_vmem [thread:$0]  %s1, 128, %s26, [#allocation8], 64, 64, 4
    $region9: #{tpu_custom_call.1} parent=1 // pred_fallthru
      _
    // Predicated region
    $region10: #{tpu_custom_call.1} parent=1 // pred_check
      _
    $region11: #{tpu_custom_call.1} parent=1 // pred_check_branch
      %33 = sbr.rel (0) target = $region13
    $region12: #{tpu_custom_call.1} parent=1 // pred_region
      %34 = dma.done [#allocation5], 64
    $region13: #{tpu_custom_call.1} parent=1 // pred_fallthru
      _
    // Predicated region
    $region14: #{tpu_custom_call.1} parent=1 // pred_check
      _
    $region15: #{tpu_custom_call.1} parent=1 // pred_check_branch
      %36 = sbr.rel (0) target = $region17
    $region16: #{tpu_custom_call.1} parent=1 // pred_region
      %37 = dma.done [#allocation8], 128
    $region17: #{tpu_custom_call.1} parent=1 // pred_fallthru
      _
    %p39 = scmp.eq.s32.totalorder 0, 0
    // Predicated region
    $region18: #{tpu_custom_call.1} parent=1 // pred_check
      %p40 = pneg %p39
    $region19: #{tpu_custom_call.1} parent=1 // pred_check_branch
      %42 = sbr.rel (%p40) target = $region21
    $region20: #{tpu_custom_call.1} parent=1 // pred_region
      %vm43 = vcmask 57344
      %44 = vst.msk [vmem:[#allocation2] sm:$0x1] %vm43, -1e+30
      %45 = vst.msk [vmem:[#allocation3] sm:$0x1] %vm43, 0.0
    $region21: #{tpu_custom_call.1} parent=1 // pred_fallthru
      _
    %v46 = vld [vmem:[#allocation7] sm:$0xf]
    %v47 = vld [vmem:[#allocation7 + $0x4] sm:$0xf]
    %v48 = vld [vmem:[#allocation4] sm:$0xf]
    %v51 = vunpack.c.l.b16 %v46
    %v52 = vunpack.c.l.b16 %v47
    %v53 = vpack.c.b16 %v52, %v51
    %vm54 = vcmask 261120
    %v56 = vsel %vm54, %v53, 0
    %v59 = vsel %vm54, %v48, 0
    %61 = vmatprep.subr.bf16.mxu0 0
    %62 = vmatpush1.bf16.xpose.msra.mxu0 %v59
    %63 = vmatprep.subr.bf16.mxu0 0
    %64 = vmatpush1.bf16.xpose.msra.mxu0 0
    %65 = vmatprep.subr.bf16.mxu0 0
    %66 = vmatpush1.bf16.xpose.msra.mxu0 0
    %67 = vmatprep.subr.bf16.mxu0 0
    %68 = vmatpush1.bf16.xpose.msra.mxu0 0
    %69 = vmatprep.subr.bf16.mxu0 0
    %70 = vmatpush1.bf16.xpose.msra.mxu0 0
    %71 = vmatprep.subr.bf16.mxu0 0
    %72 = vmatpush1.bf16.xpose.msra.mxu0 0
    %73 = vmatprep.subr.bf16.mxu0 0
    %74 = vmatpush1.bf16.xpose.msra.mxu0 0
    %75 = vmatprep.subr.bf16.mxu0 0
    %76 = vmatpush1.bf16.xpose.msra.mxu0 0
    %77 = vmatprep.subr.bf16.mxu0 0
    %78 = vmatpush1.bf16.xpose.msra.mxu0 0
    %79 = vmatprep.subr.bf16.mxu0 0
    %80 = vmatpush1.bf16.xpose.msra.mxu0 0
    %81 = vmatprep.subr.bf16.mxu0 0
    %82 = vmatpush1.bf16.xpose.msra.mxu0 0
    %83 = vmatprep.subr.bf16.mxu0 0
    %84 = vmatpush1.bf16.xpose.msra.mxu0 0
    %85 = vmatprep.subr.bf16.mxu0 0
    %86 = vmatpush1.bf16.xpose.msra.mxu0 0
    %87 = vmatprep.subr.bf16.mxu0 0
    %88 = vmatpush1.bf16.xpose.msra.mxu0 0
    %89 = vmatprep.subr.bf16.mxu0 0
    %90 = vmatpush1.bf16.xpose.msra.mxu0 0
    %91 = vmatprep.subr.bf16.mxu0 0
    %92 = vmatpush1.bf16.xpose.msra.mxu0 0
    %93 = vmatprep.mubr.bf16.mxu0 0
    %94 = vmatmul.mubr.bf16.gmra.mrb[0].mxu0 %v56
    %v95 = vpop.f32.mrb[0].mxu0
    %v96 = vadd.f32 0.0, %v95
    %v97 = vpop.f32.mrb[0].mxu0
    %v98 = vpop.f32.mrb[0].mxu0
    %v99 = vadd.f32 0.0, %v98
    %v100 = vpop.f32.mrb[0].mxu0
    %101 = vdwg.mxu0
    %v102 = vmul.f32 %v96, 10.0
    %v103 = vmul.f32 %v99, 10.0
    %v104 = vld [vmem:[#allocation2] sm:$0x1]
    %vm105 = vcmask 64512
    %v106 = vsel %vm105, %v102, -inf
    %v107 = vsel %vm105, %v103, -inf
    %v108 = vmax.f32 %v106, %v107
    %v109 = vrot.slane %v108, 4
    %v110 = vmax.f32 %v108, %v109
    %v111 = vrot.slane %v110, 2
    %v112 = vmax.f32 %v110, %v111
    %v113 = vrot.slane %v112, 1
    %v114 = vmax.f32 %v112, %v113
    %v115 = vmax.f32 %v104, %v114
    %v116 = vld [vmem:[#allocation3] sm:$0x1]
    %v117 = vsub.f32 %v104, %v115
    %v118 = vmul.f32 %v117, 1.442695
    %v119 = vpow.pop %v118
    %v120 = vmul.f32 %v116, %v119
    %v122 = vlaneseq
    %v123 = vshrl.u32 %v122, 7
    %v124 = vsub.s32 0, %v123
    %v125 = vrot.slane %v115, %v124
    %v127 = vsub.f32 %v102, %v125
    %v128 = vsub.f32 %v103, %v125
    %v129 = vmul.f32 %v127, 1.442695
    %v130 = vpow.pop %v129
    %v131 = vmul.f32 %v128, 1.442695
    %v132 = vpow.pop %v131
    %v133 = vsel %vm105, %v130, 0.0
    %v134 = vsel %vm105, %v132, 0.0
    %v135 = vadd.f32 %v133, %v134
    %v136 = vrot.slane %v135, 4
    %v137 = vadd.f32 %v135, %v136
    %v138 = vrot.slane %v137, 2
    %v139 = vadd.f32 %v137, %v138
    %v140 = vrot.slane %v139, 1
    %v141 = vadd.f32 %v139, %v140
    %v142 = vadd.f32 %v120, %v141
    %vm143 = vcmask 57344
    %144 = vst.msk [vmem:[#allocation3] sm:$0x1] %vm143, %v142
    %145 = vst.msk [vmem:[#allocation2] sm:$0x1] %vm143, %v115
    // Predicated region
    $region22: #{tpu_custom_call.1} parent=1 // pred_check
      %p146 = pneg %p39
    $region23: #{tpu_custom_call.1} parent=1 // pred_check_branch
      %148 = sbr.rel (%p146) target = $region25
    $region24: #{tpu_custom_call.1} parent=1 // pred_region
      %v149 = vld [vmem:[#allocation2] sm:$0x1]
      %v150 = vld [vmem:[#allocation3] sm:$0x1]
      %v151 = vlog2.pop %v150
      %v152 = vmul.f32 %v151, 0.6931472
      %v153 = vadd.f32 %v149, %v152
      %154 = vst.msk [vmem:[#allocation9] sm:$0x1] %vm143, %v153
    $region25: #{tpu_custom_call.1} parent=1 // pred_fallthru
      _
    // Predicated region
    $region26: #{tpu_custom_call.1} parent=1 // pred_check
      _
    $region27: #{tpu_custom_call.1} parent=1 // pred_check_branch
      %156 = sbr.rel (0) target = $region29
    $region28: #{tpu_custom_call.1} parent=1 // pred_region
      %s158 = ssub.s32 16, 16
      %159 = vsyncadd [#allocation6], %s158
      %s161 = sshll.u32 [#allocation9], 4
      %s162 = int_to_ptr.vmem [resolvable:$true] %s161
      %164 = dma.vmem_to_hbm [thread:$0]  %s162, 16, %s2, [#allocation6]
    $region29: #{tpu_custom_call.1} parent=1 // pred_fallthru
      _
    // Predicated region
    $region30: #{tpu_custom_call.1} parent=1 // pred_check
      _
    $region31: #{tpu_custom_call.1} parent=1 // pred_check_branch
      %166 = sbr.rel (0) target = $region33
    $region32: #{tpu_custom_call.1} parent=1 // pred_region
      %167 = dma.done [#allocation6], 16
    $region33: #{tpu_custom_call.1} parent=1 // pred_fallthru
      _
    %168 = vsyncpa [#allocation5], 1
    %169 = vsyncpa [#allocation8], 1
    %170 = vsyncpa [#allocation6], 1

</llo_original>
